<compile_context>
chip_gen: v6e
topology: v6e:2x2x1
jax: 0.10.0
libtpu: 0.0.40
codegen_flags: <defaults>
</compile_context>

<pallas_src>
import jax
import jax.numpy as jnp
from jax.experimental import pallas as pl
from jax.experimental.pallas import tpu as pltpu


def critic_kernel(s_ref, a_ref,
                  w1s_ref, w1a_ref, b1_ref,
                  w2_ref, b2_ref,
                  w3_ref, b3_ref,
                  w4_ref, b4_ref,
                  o_ref):
    # Layer 1: split matmul (state part + action part) replaces the lane-axis
    # concatenate; accumulation happens in f32 on the MXU output.
    h = (jnp.dot(s_ref[...], w1s_ref[...], preferred_element_type=jnp.float32)
         + jnp.dot(a_ref[...], w1a_ref[...], preferred_element_type=jnp.float32)
         + b1_ref[...])
    h = jnp.maximum(h, 0.0)

    # Layer 2 + ReLU.
    h = jnp.dot(h.astype(w2_ref.dtype), w2_ref[...],
                preferred_element_type=jnp.float32) + b2_ref[...]
    h = jnp.maximum(h, 0.0)

    # Layer 3 + ReLU.
    h = jnp.dot(h.astype(w3_ref.dtype), w3_ref[...],
                preferred_element_type=jnp.float32) + b3_ref[...]
    h = jnp.maximum(h, 0.0)

    # Output layer: fan_out == 1, so skip the MXU and use a VPU multiply plus
    # an XLU lane reduction. w4_ref is a (1, hidden2) row; b4 is an SMEM scalar.
    w4_row = w4_ref[...].astype(jnp.float32)                  # (1, hidden2)
    q = jnp.sum(h * w4_row, axis=1, keepdims=True) + b4_ref[0, 0]
    o_ref[...] = q.astype(o_ref.dtype)


def _round_up(x, m):
    return ((x + m - 1) // m) * m


def _batch_tile(batch, n_states, action_dim, hidden2, block_batch):
    """Largest batch tile (multiple of 8 sublanes) whose f32 intermediates and
    double-buffered input tiles stay well inside the default scoped-VMEM
    budget (16 MiB on v5e, 32 MiB on v6e/v7x)."""
    vmem_budget = 8 * 1024 * 1024   # conservative: leaves >= half the budget
    per_row_bytes = 4 * (3 * hidden2 + 2 * (n_states + action_dim) + 2)
    tb_cap = max(8, (vmem_budget // max(per_row_bytes, 1)) // 8 * 8)
    return min(block_batch, tb_cap, _round_up(batch, 8))


def critic_forward(state, action, params, *, block_batch=1024,
                   compute_dtype=jnp.float32):
    """Run the Critic MLP as a single batch-tiled Pallas kernel."""
    (w1, b1), (w2, b2), (w3, b3), (w4, b4) = params
    batch, n_states = state.shape
    action_dim = action.shape[1]
    hidden2 = w1.shape[1]

    # Split the first-layer weights so the kernel never concatenates on the
    # lane axis; lay out the output weights as a (1, hidden2) row and the
    # output bias as an SMEM scalar.
    w1_s = w1[:n_states, :].astype(compute_dtype)
    w1_a = w1[n_states:, :].astype(compute_dtype)
    w4_row = w4.reshape(1, hidden2).astype(jnp.float32)
    b4_s = b4.reshape(1, 1).astype(jnp.float32)

    state_c = state.astype(compute_dtype)
    action_c = action.astype(compute_dtype)
    w2_c = w2.astype(compute_dtype)
    w3_c = w3.astype(compute_dtype)
    # Biases stay f32: bias-add / ReLU happen on the f32 MXU accumulators.
    b1_f = b1.reshape(1, hidden2).astype(jnp.float32)
    b2_f = b2.reshape(1, hidden2).astype(jnp.float32)
    b3_f = b3.reshape(1, hidden2).astype(jnp.float32)

    # Batch tile (multiple of 8 sublanes, VMEM-aware cap); pad the batch to a
    # whole number of tiles (padded rows are sliced off afterwards). No pad is
    # emitted when the batch is already tile-aligned (the common case).
    tb = _batch_tile(batch, n_states, action_dim, hidden2, block_batch)
    padded = _round_up(batch, tb)
    if padded != batch:
        pad = padded - batch
        state_c = jnp.pad(state_c, ((0, pad), (0, 0)))
        action_c = jnp.pad(action_c, ((0, pad), (0, 0)))
    grid = (padded // tb,)

    def resident(arr):
        # Whole array, same block every grid step -> stays VMEM-resident.
        return pl.BlockSpec(arr.shape, lambda i: (0,) * arr.ndim)

    out = pl.pallas_call(
        critic_kernel,
        out_shape=jax.ShapeDtypeStruct((padded, 1), jnp.float32),
        grid=grid,
        in_specs=[
            pl.BlockSpec((tb, n_states), lambda i: (i, 0)),      # state tile
            pl.BlockSpec((tb, action_dim), lambda i: (i, 0)),    # action tile
            resident(w1_s), resident(w1_a), resident(b1_f),
            resident(w2_c), resident(b2_f),
            resident(w3_c), resident(b3_f),
            resident(w4_row),
            pl.BlockSpec(memory_space=pltpu.MemorySpace.SMEM),   # b4 scalar
        ],
        out_specs=pl.BlockSpec((tb, 1), lambda i: (i, 0)),
        compiler_params=pltpu.CompilerParams(
            dimension_semantics=("parallel",)),
    )(state_c, action_c,
      w1_s, w1_a, b1_f,
      w2_c, b2_f,
      w3_c, b3_f,
      w4_row, b4_s)
    return out[:batch] if padded != batch else out


def init_params(key, n_states, action_dim, hidden2):
    """Deterministic, PyTorch-Linear-like init. Weights stored as (in, out)."""
    dims = [(n_states + action_dim, hidden2),
            (hidden2, hidden2),
            (hidden2, hidden2),
            (hidden2, 1)]
    params = []
    for (fan_in, fan_out) in dims:
        key, kw, kb = jax.random.split(key, 3)
        bound = 1.0 / jnp.sqrt(fan_in)
        w = jax.random.uniform(kw, (fan_in, fan_out), jnp.float32, -bound, bound)
        b = jax.random.uniform(kb, (1, fan_out), jnp.float32, -bound, bound)
        params.append((w, b))
    return params


def reference_forward(state, action, params):
    x = jnp.concatenate([state, action], axis=1)
    for i, (w, b) in enumerate(params):
        x = x @ w + b
        if i < len(params) - 1:
            x = jnp.maximum(x, 0.0)
    return x


if __name__ == "__main__":
    # Small deterministic shapes consistent with the module's forward.
    batch, n_states, action_dim, hidden2 = 8, 16, 8, 32

    key = jax.random.PRNGKey(0)
    k_state, k_action, k_params = jax.random.split(key, 3)
    state = jax.random.normal(k_state, (batch, n_states), jnp.float32)
    action = jax.random.normal(k_action, (batch, action_dim), jnp.float32)
    params = init_params(k_params, n_states, action_dim, hidden2)

    q = critic_forward(state, action, params)
    q = jax.block_until_ready(q)
    q_ref = reference_forward(state, action, params)
    assert q.shape == (batch, 1), q.shape
    assert jnp.allclose(q, q_ref, atol=1e-5, rtol=1e-5), (q, q_ref)

    # Exercise the multi-block, padded-batch path (grid > 1 + row padding).
    big_batch = 200
    k_s2, k_a2 = jax.random.split(jax.random.PRNGKey(1))
    state2 = jax.random.normal(k_s2, (big_batch, n_states), jnp.float32)
    action2 = jax.random.normal(k_a2, (big_batch, action_dim), jnp.float32)
    q2 = critic_forward(state2, action2, params, block_batch=64)
    q2 = jax.block_until_ready(q2)
    q2_ref = reference_forward(state2, action2, params)
    assert q2.shape == (big_batch, 1), q2.shape
    assert jnp.allclose(q2, q2_ref, atol=1e-5, rtol=1e-5)

    print("KERNEL_OK")
</pallas_src>

<mosaic_0001>
module attributes {stable_mosaic.version = 11 : i64} {
  func.func @critic_kernel(%arg0: i32, %arg1: memref<8x16xf32, #tpu.memory_space<vmem>>, %arg2: memref<8x8xf32, #tpu.memory_space<vmem>>, %arg3: memref<16x32xf32, #tpu.memory_space<vmem>>, %arg4: memref<8x32xf32, #tpu.memory_space<vmem>>, %arg5: memref<1x32xf32, #tpu.memory_space<vmem>>, %arg6: memref<32x32xf32, #tpu.memory_space<vmem>>, %arg7: memref<1x32xf32, #tpu.memory_space<vmem>>, %arg8: memref<32x32xf32, #tpu.memory_space<vmem>>, %arg9: memref<1x32xf32, #tpu.memory_space<vmem>>, %arg10: memref<1x32xf32, #tpu.memory_space<vmem>>, %arg11: memref<1x1xf32, #tpu.memory_space<smem>>, %arg12: memref<8x1xf32, #tpu.memory_space<vmem>>) attributes {dimension_semantics = [#tpu.dimension_semantics<parallel>], iteration_bounds = array<i64: 1>, scalar_prefetch = 0 : i64, scratch_operands = 0 : i64, tpu.core_type = #tpu.core_type<tc>, window_params = [{transform_indices = @transform_0, window_bounds = array<i64: 8, 16>}, {transform_indices = @transform_1, window_bounds = array<i64: 8, 8>}, {pipeline_mode = #tpu.pipeline_mode<synchronous>, transform_indices = @transform_2, window_bounds = array<i64: 16, 32>}, {pipeline_mode = #tpu.pipeline_mode<synchronous>, transform_indices = @transform_3, window_bounds = array<i64: 8, 32>}, {pipeline_mode = #tpu.pipeline_mode<synchronous>, transform_indices = @transform_4, window_bounds = array<i64: 1, 32>}, {pipeline_mode = #tpu.pipeline_mode<synchronous>, transform_indices = @transform_5, window_bounds = array<i64: 32, 32>}, {pipeline_mode = #tpu.pipeline_mode<synchronous>, transform_indices = @transform_6, window_bounds = array<i64: 1, 32>}, {pipeline_mode = #tpu.pipeline_mode<synchronous>, transform_indices = @transform_7, window_bounds = array<i64: 32, 32>}, {pipeline_mode = #tpu.pipeline_mode<synchronous>, transform_indices = @transform_8, window_bounds = array<i64: 1, 32>}, {pipeline_mode = #tpu.pipeline_mode<synchronous>, transform_indices = @transform_9, window_bounds = array<i64: 1, 32>}, {transform_indices = @transform_10, window_bounds = array<i64: 1, 1>}, {transform_indices = @transform_11, window_bounds = array<i64: 8, 1>}]} {
    %c0 = arith.constant 0 : index
    %c0_0 = arith.constant 0 : index
    %0 = vector.load %arg1[%c0, %c0_0] : memref<8x16xf32, #tpu.memory_space<vmem>>, vector<8x16xf32>
    %c0_1 = arith.constant 0 : index
    %c0_2 = arith.constant 0 : index
    %1 = vector.load %arg3[%c0_1, %c0_2] : memref<16x32xf32, #tpu.memory_space<vmem>>, vector<16x32xf32>
    %cst = arith.constant dense<0.000000e+00> : vector<8x32xf32>
    %2 = tpu.matmul %0, %1, %cst {dimension_numbers = #tpu.dot_dimension_numbers<[1], [0], [0], [1], [0, 0, 1, 1], [], []>} : vector<8x16xf32>, vector<16x32xf32>, vector<8x32xf32> -> vector<8x32xf32>
    %c0_3 = arith.constant 0 : index
    %c0_4 = arith.constant 0 : index
    %3 = vector.load %arg2[%c0_3, %c0_4] : memref<8x8xf32, #tpu.memory_space<vmem>>, vector<8x8xf32>
    %c0_5 = arith.constant 0 : index
    %c0_6 = arith.constant 0 : index
    %4 = vector.load %arg4[%c0_5, %c0_6] : memref<8x32xf32, #tpu.memory_space<vmem>>, vector<8x32xf32>
    %cst_7 = arith.constant dense<0.000000e+00> : vector<8x32xf32>
    %5 = tpu.matmul %3, %4, %cst_7 {dimension_numbers = #tpu.dot_dimension_numbers<[1], [0], [0], [1], [0, 0, 1, 1], [], []>} : vector<8x8xf32>, vector<8x32xf32>, vector<8x32xf32> -> vector<8x32xf32>
    %6 = arith.addf %2, %5 : vector<8x32xf32>
    %c0_8 = arith.constant 0 : index
    %c0_9 = arith.constant 0 : index
    %7 = vector.load %arg5[%c0_8, %c0_9] : memref<1x32xf32, #tpu.memory_space<vmem>>, vector<1x32xf32>
    %8 = vector.broadcast %7 : vector<1x32xf32> to vector<8x32xf32>
    %9 = arith.addf %6, %8 : vector<8x32xf32>
    %cst_10 = arith.constant 0.000000e+00 : f32
    %10 = vector.broadcast %cst_10 : f32 to vector<8x32xf32>
    %11 = arith.maximumf %9, %10 : vector<8x32xf32>
    %c0_11 = arith.constant 0 : index
    %c0_12 = arith.constant 0 : index
    %12 = vector.load %arg6[%c0_11, %c0_12] : memref<32x32xf32, #tpu.memory_space<vmem>>, vector<32x32xf32>
    %cst_13 = arith.constant dense<0.000000e+00> : vector<8x32xf32>
    %13 = tpu.matmul %11, %12, %cst_13 {dimension_numbers = #tpu.dot_dimension_numbers<[1], [0], [0], [1], [0, 0, 1, 1], [], []>} : vector<8x32xf32>, vector<32x32xf32>, vector<8x32xf32> -> vector<8x32xf32>
    %c0_14 = arith.constant 0 : index
    %c0_15 = arith.constant 0 : index
    %14 = vector.load %arg7[%c0_14, %c0_15] : memref<1x32xf32, #tpu.memory_space<vmem>>, vector<1x32xf32>
    %15 = vector.broadcast %14 : vector<1x32xf32> to vector<8x32xf32>
    %16 = arith.addf %13, %15 : vector<8x32xf32>
    %cst_16 = arith.constant 0.000000e+00 : f32
    %17 = vector.broadcast %cst_16 : f32 to vector<8x32xf32>
    %18 = arith.maximumf %16, %17 : vector<8x32xf32>
    %c0_17 = arith.constant 0 : index
    %c0_18 = arith.constant 0 : index
    %19 = vector.load %arg8[%c0_17, %c0_18] : memref<32x32xf32, #tpu.memory_space<vmem>>, vector<32x32xf32>
    %cst_19 = arith.constant dense<0.000000e+00> : vector<8x32xf32>
    %20 = tpu.matmul %18, %19, %cst_19 {dimension_numbers = #tpu.dot_dimension_numbers<[1], [0], [0], [1], [0, 0, 1, 1], [], []>} : vector<8x32xf32>, vector<32x32xf32>, vector<8x32xf32> -> vector<8x32xf32>
    %c0_20 = arith.constant 0 : index
    %c0_21 = arith.constant 0 : index
    %21 = vector.load %arg9[%c0_20, %c0_21] : memref<1x32xf32, #tpu.memory_space<vmem>>, vector<1x32xf32>
    %22 = vector.broadcast %21 : vector<1x32xf32> to vector<8x32xf32>
    %23 = arith.addf %20, %22 : vector<8x32xf32>
    %cst_22 = arith.constant 0.000000e+00 : f32
    %24 = vector.broadcast %cst_22 : f32 to vector<8x32xf32>
    %25 = arith.maximumf %23, %24 : vector<8x32xf32>
    %c0_23 = arith.constant 0 : index
    %c0_24 = arith.constant 0 : index
    %26 = vector.load %arg10[%c0_23, %c0_24] : memref<1x32xf32, #tpu.memory_space<vmem>>, vector<1x32xf32>
    %27 = vector.broadcast %26 : vector<1x32xf32> to vector<8x32xf32>
    %28 = arith.mulf %25, %27 : vector<8x32xf32>
    %cst_25 = arith.constant dense<0.000000e+00> : vector<8xf32>
    %29 = vector.multi_reduction <add>, %28, %cst_25 [1] : vector<8x32xf32> to vector<8xf32>
    %30 = vector.shape_cast %29 : vector<8xf32> to vector<8x1xf32>
    %c0_26 = arith.constant 0 : index
    %c0_27 = arith.constant 0 : index
    %31 = memref.load %arg11[%c0_26, %c0_27] : memref<1x1xf32, #tpu.memory_space<smem>>
    %32 = vector.broadcast %31 : f32 to vector<8x1xf32>
    %33 = arith.addf %30, %32 : vector<8x1xf32>
    %c0_28 = arith.constant 0 : index
    %c0_29 = arith.constant 0 : index
    %34 = vector.load %arg12[%c0_28, %c0_29] : memref<8x1xf32, #tpu.memory_space<vmem>>, vector<8x1xf32>
    tpu.vector_store %arg12[%c0_28, %c0_29], %33 {strides = array<i32>} : memref<8x1xf32, #tpu.memory_space<vmem>>, vector<8x1xf32>,
    return
  }
  func.func @transform_0(%arg0: i32) -> (i32, i32) {
    %c0_i32 = arith.constant 0 : i32
    %c0_i32_0 = arith.constant 0 : i32
    return %arg0, %c0_i32 : i32, i32
  }
  func.func @transform_1(%arg0: i32) -> (i32, i32) {
    %c0_i32 = arith.constant 0 : i32
    %c0_i32_0 = arith.constant 0 : i32
    return %arg0, %c0_i32 : i32, i32
  }
  func.func @transform_2(%arg0: i32) -> (i32, i32) {
    %c0_i32 = arith.constant 0 : i32
    %c0_i32_0 = arith.constant 0 : i32
    %c0_i32_1 = arith.constant 0 : i32
    return %c0_i32, %c0_i32_0 : i32, i32
  }
  func.func @transform_3(%arg0: i32) -> (i32, i32) {
    %c0_i32 = arith.constant 0 : i32
    %c0_i32_0 = arith.constant 0 : i32
    %c0_i32_1 = arith.constant 0 : i32
    return %c0_i32, %c0_i32_0 : i32, i32
  }
  func.func @transform_4(%arg0: i32) -> (i32, i32) {
    %c0_i32 = arith.constant 0 : i32
    %c0_i32_0 = arith.constant 0 : i32
    %c0_i32_1 = arith.constant 0 : i32
    return %c0_i32, %c0_i32_0 : i32, i32
  }
  func.func @transform_5(%arg0: i32) -> (i32, i32) {
    %c0_i32 = arith.constant 0 : i32
    %c0_i32_0 = arith.constant 0 : i32
    %c0_i32_1 = arith.constant 0 : i32
    return %c0_i32, %c0_i32_0 : i32, i32
  }
  func.func @transform_6(%arg0: i32) -> (i32, i32) {
    %c0_i32 = arith.constant 0 : i32
    %c0_i32_0 = arith.constant 0 : i32
    %c0_i32_1 = arith.constant 0 : i32
    return %c0_i32, %c0_i32_0 : i32, i32
  }
  func.func @transform_7(%arg0: i32) -> (i32, i32) {
    %c0_i32 = arith.constant 0 : i32
    %c0_i32_0 = arith.constant 0 : i32
    %c0_i32_1 = arith.constant 0 : i32
    return %c0_i32, %c0_i32_0 : i32, i32
  }
  func.func @transform_8(%arg0: i32) -> (i32, i32) {
    %c0_i32 = arith.constant 0 : i32
    %c0_i32_0 = arith.constant 0 : i32
    %c0_i32_1 = arith.constant 0 : i32
    return %c0_i32, %c0_i32_0 : i32, i32
  }
  func.func @transform_9(%arg0: i32) -> (i32, i32) {
    %c0_i32 = arith.constant 0 : i32
    %c0_i32_0 = arith.constant 0 : i32
    %c0_i32_1 = arith.constant 0 : i32
    return %c0_i32, %c0_i32_0 : i32, i32
  }
  func.func @transform_10(%arg0: i32) -> (i32, i32) {
    %c0_i32 = arith.constant 0 : i32
    %c0_i32_0 = arith.constant 0 : i32
    %c0_i32_1 = arith.constant 0 : i32
    return %c0_i32, %c0_i32_0 : i32, i32
  }
  func.func @transform_11(%arg0: i32) -> (i32, i32) {
    %c0_i32 = arith.constant 0 : i32
    %c0_i32_0 = arith.constant 0 : i32
    return %arg0, %c0_i32 : i32, i32
  }
}

</mosaic_0001>

<llo_original>
// kernel: tpu_custom_call.1
$region0: #{tpu_custom_call.1}
  #allocation0 [shape = 'u32[]', space=smem, size = 0x4, offset = 0x4, fixed_abs, tag = 'smem constant byte address 0x4 - core index']
  #allocation1 [shape = 'u32[144,128]{1,0:T(1,128)}', space=vmem, size = 0x12000, scoped, tag = 'internal scratch']
  #allocation2 [shape = 'f32[1,1]{1,0:T(1,128)S(6)}', space=smem, size = 0x200, scoped, tag = 'scoped memory for tpu_custom_call.1']
  %s0 = inlined_call_operand.hbm [shape: f32[8,16], index: 0, kind: input, shape index: {}]
  %s1 = inlined_call_operand.hbm [shape: f32[8,8], index: 1, kind: input, shape index: {}]
  %s2 = inlined_call_operand.hbm [shape: f32[16,32], index: 2, kind: input, shape index: {}]
  %s3 = inlined_call_operand.hbm [shape: f32[8,32], index: 3, kind: input, shape index: {}]
  %s4 = inlined_call_operand.vmem [shape: f32[1,32], index: 4, kind: input, shape index: {}]
  %s5 = inlined_call_operand.hbm [shape: f32[32,32], index: 5, kind: input, shape index: {}]
  %s6 = inlined_call_operand.vmem [shape: f32[1,32], index: 6, kind: input, shape index: {}]
  %s7 = inlined_call_operand.hbm [shape: f32[32,32], index: 7, kind: input, shape index: {}]
  %s8 = inlined_call_operand.vmem [shape: f32[1,32], index: 8, kind: input, shape index: {}]
  %s9 = inlined_call_operand.vmem [shape: f32[1,32], index: 9, kind: input, shape index: {}]
  %s10 = inlined_call_operand.<no memory space> [shape: f32[1,1], index: 10, kind: input, shape index: {}]
  %s11 = inlined_call_operand.vmem [shape: f32[8,1], index: 11, kind: output, shape index: {}]
  %s12 = sld [smem:[#allocation0]]
  $region78: #{tpu_custom_call.1} parent=0
    _
  %s14 = ssub.s32 1, %s12
  %s15 = scalar_select 0, %s14, %s12
  %16 = sst [smem:[#allocation2]] %s10
  $region1: #{tpu_custom_call.1} parent=0
    #allocation3 [shape = 'u8[4096]{0}', space=vmem, size = 0x1000, scoped, tag = 'input window, operand 0, single buffered']
    #allocation4 [shape = 's32[1]{0}', space=sflag, size = 0x4, scoped, tag = 'scoped memory for tpu_custom_call.1']
    #allocation5 [shape = 'u8[4096]{0}', space=vmem, size = 0x1000, scoped, tag = 'input window, operand 1, single buffered']
    #allocation6 [shape = 's32[1]{0}', space=sflag, size = 0x4, scoped, tag = 'scoped memory for tpu_custom_call.1']
    #allocation7 [shape = 'u8[8192]{0}', space=vmem, size = 0x2000, scoped, tag = 'input window, operand 2, single buffered']
    #allocation8 [shape = 'u8[4096]{0}', space=vmem, size = 0x1000, scoped, tag = 'input window, operand 3, single buffered']
    #allocation9 [shape = 's32[1]{0}', space=sflag, size = 0x4, scoped, tag = 'scoped memory for tpu_custom_call.1']
    #allocation10 [shape = 'u8[16384]{0}', space=vmem, size = 0x4000, scoped, tag = 'input window, operand 5, single buffered']
    #allocation11 [shape = 'u8[16384]{0}', space=vmem, size = 0x4000, scoped, tag = 'input window, operand 7, single buffered']
    #allocation12 [shape = 's32[1]{0}', space=sflag, size = 0x4, scoped, tag = 'scoped memory for tpu_custom_call.1']
    %17 = vsyncpa [#allocation4], 0
    %18 = vsyncpa [#allocation6], 0
    %19 = vsyncpa [#allocation9], 0
    %20 = vsyncpa [#allocation12], 0
    // Predicated region
    $region2: #{tpu_custom_call.1} parent=1 // pred_check
      _
    $region3: #{tpu_custom_call.1} parent=1 // pred_check_branch
      %22 = sbr.rel (0) target = $region5
    $region4: #{tpu_custom_call.1} parent=1 // pred_region
      %s24 = ssub.s32 128, 128
      %25 = vsyncadd [#allocation4], %s24
      %s27 = sshll.u32 [#allocation3], 4
      %s28 = int_to_ptr.vmem [resolvable:$true] %s27
      %30 = dma.hbm_to_vmem [thread:$0]  %s0, 128, %s28, [#allocation4]
    $region5: #{tpu_custom_call.1} parent=1 // pred_fallthru
      _
    // Predicated region
    $region6: #{tpu_custom_call.1} parent=1 // pred_check
      _
    $region7: #{tpu_custom_call.1} parent=1 // pred_check_branch
      %32 = sbr.rel (0) target = $region9
    $region8: #{tpu_custom_call.1} parent=1 // pred_region
      %s34 = ssub.s32 128, 128
      %35 = vsyncadd [#allocation6], %s34
      %s37 = sshll.u32 [#allocation5], 4
      %s38 = int_to_ptr.vmem [resolvable:$true] %s37
      %40 = dma.hbm_to_vmem [thread:$0]  %s1, 128, %s38, [#allocation6]
    $region9: #{tpu_custom_call.1} parent=1 // pred_fallthru
      _
    // Predicated region
    $region10: #{tpu_custom_call.1} parent=1 // pred_check
      _
    $region11: #{tpu_custom_call.1} parent=1 // pred_check_branch
      %42 = sbr.rel (0) target = $region13
    $region12: #{tpu_custom_call.1} parent=1 // pred_region
      %s44 = ssub.s32 256, 256
      %45 = vsyncadd [#allocation6], %s44
      %s46 = sshll.u32 [#allocation7], 4
      %s47 = int_to_ptr.vmem [resolvable:$true] %s46
      %52 = dma.hbm_to_vmem [thread:$0]  %s2, 256, %s47, [#allocation6], 128, 128, 8
    $region13: #{tpu_custom_call.1} parent=1 // pred_fallthru
      _
    // Predicated region
    $region14: #{tpu_custom_call.1} parent=1 // pred_check
      _
    $region15: #{tpu_custom_call.1} parent=1 // pred_check_branch
      %54 = sbr.rel (0) target = $region17
    $region16: #{tpu_custom_call.1} parent=1 // pred_region
      %s56 = ssub.s32 128, 128
      %57 = vsyncadd [#allocation9], %s56
      %s59 = sshll.u32 [#allocation8], 4
      %s60 = int_to_ptr.vmem [resolvable:$true] %s59
      %62 = dma.hbm_to_vmem [thread:$0]  %s3, 128, %s60, [#allocation9]
    $region17: #{tpu_custom_call.1} parent=1 // pred_fallthru
      _
    // Predicated region
    $region18: #{tpu_custom_call.1} parent=1 // pred_check
      _
    $region19: #{tpu_custom_call.1} parent=1 // pred_check_branch
      %64 = sbr.rel (0) target = $region21
    $region20: #{tpu_custom_call.1} parent=1 // pred_region
      _
    $region21: #{tpu_custom_call.1} parent=1 // pred_fallthru
      _
    // Predicated region
    $region22: #{tpu_custom_call.1} parent=1 // pred_check
      _
    $region23: #{tpu_custom_call.1} parent=1 // pred_check_branch
      %66 = sbr.rel (0) target = $region25
    $region24: #{tpu_custom_call.1} parent=1 // pred_region
      %s68 = ssub.s32 512, 512
      %69 = vsyncadd [#allocation9], %s68
      %s70 = sshll.u32 [#allocation10], 4
      %s71 = int_to_ptr.vmem [resolvable:$true] %s70
      %76 = dma.hbm_to_vmem [thread:$0]  %s5, 512, %s71, [#allocation9], 128, 128, 8
    $region25: #{tpu_custom_call.1} parent=1 // pred_fallthru
      _
    // Predicated region
    $region26: #{tpu_custom_call.1} parent=1 // pred_check
      _
    $region27: #{tpu_custom_call.1} parent=1 // pred_check_branch
      %78 = sbr.rel (0) target = $region29
    $region28: #{tpu_custom_call.1} parent=1 // pred_region
      _
    $region29: #{tpu_custom_call.1} parent=1 // pred_fallthru
      _
    // Predicated region
    $region30: #{tpu_custom_call.1} parent=1 // pred_check
      _
    $region31: #{tpu_custom_call.1} parent=1 // pred_check_branch
      %80 = sbr.rel (0) target = $region33
    $region32: #{tpu_custom_call.1} parent=1 // pred_region
      %s82 = ssub.s32 512, 512
      %83 = vsyncadd [#allocation12], %s82
      %s84 = sshll.u32 [#allocation11], 4
      %s85 = int_to_ptr.vmem [resolvable:$true] %s84
      %90 = dma.hbm_to_vmem [thread:$0]  %s7, 512, %s85, [#allocation12], 128, 128, 8
    $region33: #{tpu_custom_call.1} parent=1 // pred_fallthru
      _
    // Predicated region
    $region34: #{tpu_custom_call.1} parent=1 // pred_check
      _
    $region35: #{tpu_custom_call.1} parent=1 // pred_check_branch
      %92 = sbr.rel (0) target = $region37
    $region36: #{tpu_custom_call.1} parent=1 // pred_region
      _
    $region37: #{tpu_custom_call.1} parent=1 // pred_fallthru
      _
    // Predicated region
    $region38: #{tpu_custom_call.1} parent=1 // pred_check
      _
    $region39: #{tpu_custom_call.1} parent=1 // pred_check_branch
      %94 = sbr.rel (0) target = $region41
    $region40: #{tpu_custom_call.1} parent=1 // pred_region
      _
    $region41: #{tpu_custom_call.1} parent=1 // pred_fallthru
      _
    // Predicated region
    $region42: #{tpu_custom_call.1} parent=1 // pred_check
      _
    $region43: #{tpu_custom_call.1} parent=1 // pred_check_branch
      %96 = sbr.rel (0) target = $region45
    $region44: #{tpu_custom_call.1} parent=1 // pred_region
      _
    $region45: #{tpu_custom_call.1} parent=1 // pred_fallthru
      _
    // Predicated region
    $region46: #{tpu_custom_call.1} parent=1 // pred_check
      _
    $region47: #{tpu_custom_call.1} parent=1 // pred_check_branch
      %98 = sbr.rel (0) target = $region49
    $region48: #{tpu_custom_call.1} parent=1 // pred_region
      %99 = dma.done [#allocation4], 128
    $region49: #{tpu_custom_call.1} parent=1 // pred_fallthru
      _
    // Predicated region
    $region50: #{tpu_custom_call.1} parent=1 // pred_check
      _
    $region51: #{tpu_custom_call.1} parent=1 // pred_check_branch
      %101 = sbr.rel (0) target = $region53
    $region52: #{tpu_custom_call.1} parent=1 // pred_region
      %102 = dma.done [#allocation6], 128
    $region53: #{tpu_custom_call.1} parent=1 // pred_fallthru
      _
    // Predicated region
    $region54: #{tpu_custom_call.1} parent=1 // pred_check
      _
    $region55: #{tpu_custom_call.1} parent=1 // pred_check_branch
      %104 = sbr.rel (0) target = $region57
    $region56: #{tpu_custom_call.1} parent=1 // pred_region
      %105 = dma.done [#allocation6], 256
    $region57: #{tpu_custom_call.1} parent=1 // pred_fallthru
      _
    // Predicated region
    $region58: #{tpu_custom_call.1} parent=1 // pred_check
      _
    $region59: #{tpu_custom_call.1} parent=1 // pred_check_branch
      %107 = sbr.rel (0) target = $region61
    $region60: #{tpu_custom_call.1} parent=1 // pred_region
      %108 = dma.done [#allocation9], 128
    $region61: #{tpu_custom_call.1} parent=1 // pred_fallthru
      _
    // Predicated region
    $region62: #{tpu_custom_call.1} parent=1 // pred_check
      _
    $region63: #{tpu_custom_call.1} parent=1 // pred_check_branch
      %110 = sbr.rel (0) target = $region65
    $region64: #{tpu_custom_call.1} parent=1 // pred_region
      %111 = dma.done [#allocation9], 512
    $region65: #{tpu_custom_call.1} parent=1 // pred_fallthru
      _
    // Predicated region
    $region66: #{tpu_custom_call.1} parent=1 // pred_check
      _
    $region67: #{tpu_custom_call.1} parent=1 // pred_check_branch
      %113 = sbr.rel (0) target = $region69
    $region68: #{tpu_custom_call.1} parent=1 // pred_region
      %114 = dma.done [#allocation12], 512
    $region69: #{tpu_custom_call.1} parent=1 // pred_fallthru
      _
    %v115 = vld [vmem:[#allocation3] sm:$0xff]
    %v116 = vld [vmem:[#allocation7] sm:$0xff]
    %v117 = vld [vmem:[#allocation7 + $0x8] sm:$0xff]
    %v118 = vld [vmem:[#allocation5] sm:$0xff]
    %v119 = vld [vmem:[#allocation8] sm:$0xff]
    %vm120 = vcmask 64512
    %v122 = vsel %vm120, %v118, 0
    %124 = vmatprep.subr.mxu0 0.0
    %125 = vmatpush1.msra.mxu0 0.0
    %126 = vmatprep.subr.mxu0 0.0
    %127 = vmatpush1.msra.mxu0 0.0
    %128 = vmatprep.subr.mxu0 0.0
    %129 = vmatpush1.msra.mxu0 0.0
    %130 = vmatprep.subr.mxu0 0.0
    %131 = vmatpush1.msra.mxu0 0.0
    %132 = vmatprep.subr.mxu0 0.0
    %133 = vmatpush1.msra.mxu0 0.0
    %134 = vmatprep.subr.mxu0 0.0
    %135 = vmatpush1.msra.mxu0 0.0
    %136 = vmatprep.subr.mxu0 0.0
    %137 = vmatpush1.msra.mxu0 0.0
    %138 = vmatprep.subr.mxu0 0.0
    %139 = vmatpush1.msra.mxu0 0.0
    %140 = vmatprep.subr.mxu0 0.0
    %141 = vmatpush1.msra.mxu0 0.0
    %142 = vmatprep.subr.mxu0 0.0
    %143 = vmatpush1.msra.mxu0 0.0
    %144 = vmatprep.subr.mxu0 0.0
    %145 = vmatpush1.msra.mxu0 0.0
    %146 = vmatprep.subr.mxu0 0.0
    %147 = vmatpush1.msra.mxu0 0.0
    %148 = vmatprep.subr.mxu0 0.0
    %149 = vmatpush1.msra.mxu0 0.0
    %150 = vmatprep.subr.mxu0 0.0
    %151 = vmatpush1.msra.mxu0 0.0
    %152 = vmatprep.subr.mxu0 0.0
    %153 = vmatpush1.msra.mxu0 0.0
    %154 = vmatprep.subr.mxu0 0.0
    %155 = vmatpush1.msra.mxu0 %v119
    %156 = vmatprep.subr.mxu0 0.0
    %157 = vmatpush2.msra.mxu0 0.0
    %158 = vmatprep.subr.mxu0 0.0
    %159 = vmatpush2.msra.mxu0 0.0
    %160 = vmatprep.subr.mxu0 0.0
    %161 = vmatpush2.msra.mxu0 0.0
    %162 = vmatprep.subr.mxu0 0.0
    %163 = vmatpush2.msra.mxu0 0.0
    %164 = vmatprep.subr.mxu0 0.0
    %165 = vmatpush2.msra.mxu0 0.0
    %166 = vmatprep.subr.mxu0 0.0
    %167 = vmatpush2.msra.mxu0 0.0
    %168 = vmatprep.subr.mxu0 0.0
    %169 = vmatpush2.msra.mxu0 0.0
    %170 = vmatprep.subr.mxu0 0.0
    %171 = vmatpush2.msra.mxu0 0.0
    %172 = vmatprep.subr.mxu0 0.0
    %173 = vmatpush2.msra.mxu0 0.0
    %174 = vmatprep.subr.mxu0 0.0
    %175 = vmatpush2.msra.mxu0 0.0
    %176 = vmatprep.subr.mxu0 0.0
    %177 = vmatpush2.msra.mxu0 0.0
    %178 = vmatprep.subr.mxu0 0.0
    %179 = vmatpush2.msra.mxu0 0.0
    %180 = vmatprep.subr.mxu0 0.0
    %181 = vmatpush2.msra.mxu0 0.0
    %182 = vmatprep.subr.mxu0 0.0
    %183 = vmatpush2.msra.mxu0 0.0
    %184 = vmatprep.subr.mxu0 0.0
    %185 = vmatpush2.msra.mxu0 0.0
    %186 = vmatprep.subr.mxu0 0.0
    %187 = vmatpush2.msra.mxu0 0.0
    %188 = vmatprep.mubr.f32.mxu0 0.0
    %189 = vmatmul.mubr.f32.gmra.mxu0 %v122
    %v190 = vpop.f32.mrf.mxu0
    %v191 = vadd.f32 0.0, %v190
    %v192 = vpop.f32.mrf.mxu0
    %193 = vdwg.mxu0
    %vm194 = vcmask 130048
    %v196 = vsel %vm194, %v115, 0
    %198 = vmatprep.subr.mxu0 0.0
    %199 = vmatpush1.msra.mxu0 0.0
    %200 = vmatprep.subr.mxu0 0.0
    %201 = vmatpush1.msra.mxu0 0.0
    %202 = vmatprep.subr.mxu0 0.0
    %203 = vmatpush1.msra.mxu0 0.0
    %204 = vmatprep.subr.mxu0 0.0
    %205 = vmatpush1.msra.mxu0 0.0
    %206 = vmatprep.subr.mxu0 0.0
    %207 = vmatpush1.msra.mxu0 0.0
    %208 = vmatprep.subr.mxu0 0.0
    %209 = vmatpush1.msra.mxu0 0.0
    %210 = vmatprep.subr.mxu0 0.0
    %211 = vmatpush1.msra.mxu0 0.0
    %212 = vmatprep.subr.mxu0 0.0
    %213 = vmatpush1.msra.mxu0 0.0
    %214 = vmatprep.subr.mxu0 0.0
    %215 = vmatpush1.msra.mxu0 0.0
    %216 = vmatprep.subr.mxu0 0.0
    %217 = vmatpush1.msra.mxu0 0.0
    %218 = vmatprep.subr.mxu0 0.0
    %219 = vmatpush1.msra.mxu0 0.0
    %220 = vmatprep.subr.mxu0 0.0
    %221 = vmatpush1.msra.mxu0 0.0
    %222 = vmatprep.subr.mxu0 0.0
    %223 = vmatpush1.msra.mxu0 0.0
    %224 = vmatprep.subr.mxu0 0.0
    %225 = vmatpush1.msra.mxu0 0.0
    %226 = vmatprep.subr.mxu0 0.0
    %227 = vmatpush1.msra.mxu0 %v117
    %228 = vmatprep.subr.mxu0 0.0
    %229 = vmatpush1.msra.mxu0 %v116
    %230 = vmatprep.subr.mxu0 0.0
    %231 = vmatpush2.msra.mxu0 0.0
    %232 = vmatprep.subr.mxu0 0.0
    %233 = vmatpush2.msra.mxu0 0.0
    %234 = vmatprep.subr.mxu0 0.0
    %235 = vmatpush2.msra.mxu0 0.0
    %236 = vmatprep.subr.mxu0 0.0
    %237 = vmatpush2.msra.mxu0 0.0
    %238 = vmatprep.subr.mxu0 0.0
    %239 = vmatpush2.msra.mxu0 0.0
    %240 = vmatprep.subr.mxu0 0.0
    %241 = vmatpush2.msra.mxu0 0.0
    %242 = vmatprep.subr.mxu0 0.0
    %243 = vmatpush2.msra.mxu0 0.0
    %244 = vmatprep.subr.mxu0 0.0
    %245 = vmatpush2.msra.mxu0 0.0
    %246 = vmatprep.subr.mxu0 0.0
    %247 = vmatpush2.msra.mxu0 0.0
    %248 = vmatprep.subr.mxu0 0.0
    %249 = vmatpush2.msra.mxu0 0.0
    %250 = vmatprep.subr.mxu0 0.0
    %251 = vmatpush2.msra.mxu0 0.0
    %252 = vmatprep.subr.mxu0 0.0
    %253 = vmatpush2.msra.mxu0 0.0
    %254 = vmatprep.subr.mxu0 0.0
    %255 = vmatpush2.msra.mxu0 0.0
    %256 = vmatprep.subr.mxu0 0.0
    %257 = vmatpush2.msra.mxu0 0.0
    %258 = vmatprep.subr.mxu0 0.0
    %259 = vmatpush2.msra.mxu0 0.0
    %260 = vmatprep.subr.mxu0 0.0
    %261 = vmatpush2.msra.mxu0 0.0
    %262 = vmatprep.mubr.f32.mxu0 0.0
    %263 = vmatmul.mubr.f32.gmra.mxu0 %v196
    %v264 = vpop.f32.mrf.mxu0
    %v265 = vadd.f32 %v191, %v264
    %v266 = vpop.f32.mrf.mxu0
    %267 = vdwg.mxu0
    %v268 = vld [vmem:[%s4] sm:$0x1]
    %v270 = vlaneseq
    %v271 = vshrl.u32 %v270, 7
    %v272 = vsub.s32 0, %v271
    %v273 = vrot.slane %v268, %v272
    %v275 = vadd.f32 %v265, %v273
    %v276 = vmax.f32 %v275, 0.0
    %v277 = vld [vmem:[#allocation10] sm:$0xff]
    %v278 = vld [vmem:[#allocation10 + $0x8] sm:$0xff]
    %v279 = vld [vmem:[#allocation10 + $0x10] sm:$0xff]
    %v280 = vld [vmem:[#allocation10 + $0x18] sm:$0xff]
    %v281 = vld [vmem:[%s6] sm:$0x1]
    %v283 = vlaneseq
    %v284 = vshrl.u32 %v283, 7
    %v285 = vsub.s32 0, %v284
    %v286 = vrot.slane %v281, %v285
    %vm288 = vcmask 261120
    %v290 = vsel %vm288, %v276, 0
    %292 = vmatprep.subr.mxu0 0.0
    %293 = vmatpush1.msra.mxu0 0.0
    %294 = vmatprep.subr.mxu0 0.0
    %295 = vmatpush1.msra.mxu0 0.0
    %296 = vmatprep.subr.mxu0 0.0
    %297 = vmatpush1.msra.mxu0 0.0
    %298 = vmatprep.subr.mxu0 0.0
    %299 = vmatpush1.msra.mxu0 0.0
    %300 = vmatprep.subr.mxu0 0.0
    %301 = vmatpush1.msra.mxu0 0.0
    %302 = vmatprep.subr.mxu0 0.0
    %303 = vmatpush1.msra.mxu0 0.0
    %304 = vmatprep.subr.mxu0 0.0
    %305 = vmatpush1.msra.mxu0 0.0
    %306 = vmatprep.subr.mxu0 0.0
    %307 = vmatpush1.msra.mxu0 0.0
    %308 = vmatprep.subr.mxu0 0.0
    %309 = vmatpush1.msra.mxu0 0.0
    %310 = vmatprep.subr.mxu0 0.0
    %311 = vmatpush1.msra.mxu0 0.0
    %312 = vmatprep.subr.mxu0 0.0
    %313 = vmatpush1.msra.mxu0 0.0
    %314 = vmatprep.subr.mxu0 0.0
    %315 = vmatpush1.msra.mxu0 0.0
    %316 = vmatprep.subr.mxu0 0.0
    %317 = vmatpush1.msra.mxu0 %v280
    %318 = vmatprep.subr.mxu0 0.0
    %319 = vmatpush1.msra.mxu0 %v279
    %320 = vmatprep.subr.mxu0 0.0
    %321 = vmatpush1.msra.mxu0 %v278
    %322 = vmatprep.subr.mxu0 0.0
    %323 = vmatpush1.msra.mxu0 %v277
    %324 = vmatprep.subr.mxu0 0.0
    %325 = vmatpush2.msra.mxu0 0.0
    %326 = vmatprep.subr.mxu0 0.0
    %327 = vmatpush2.msra.mxu0 0.0
    %328 = vmatprep.subr.mxu0 0.0
    %329 = vmatpush2.msra.mxu0 0.0
    %330 = vmatprep.subr.mxu0 0.0
    %331 = vmatpush2.msra.mxu0 0.0
    %332 = vmatprep.subr.mxu0 0.0
    %333 = vmatpush2.msra.mxu0 0.0
    %334 = vmatprep.subr.mxu0 0.0
    %335 = vmatpush2.msra.mxu0 0.0
    %336 = vmatprep.subr.mxu0 0.0
    %337 = vmatpush2.msra.mxu0 0.0
    %338 = vmatprep.subr.mxu0 0.0
    %339 = vmatpush2.msra.mxu0 0.0
    %340 = vmatprep.subr.mxu0 0.0
    %341 = vmatpush2.msra.mxu0 0.0
    %342 = vmatprep.subr.mxu0 0.0
    %343 = vmatpush2.msra.mxu0 0.0
    %344 = vmatprep.subr.mxu0 0.0
    %345 = vmatpush2.msra.mxu0 0.0
    %346 = vmatprep.subr.mxu0 0.0
    %347 = vmatpush2.msra.mxu0 0.0
    %348 = vmatprep.subr.mxu0 0.0
    %349 = vmatpush2.msra.mxu0 0.0
    %350 = vmatprep.subr.mxu0 0.0
    %351 = vmatpush2.msra.mxu0 0.0
    %352 = vmatprep.subr.mxu0 0.0
    %353 = vmatpush2.msra.mxu0 0.0
    %354 = vmatprep.subr.mxu0 0.0
    %355 = vmatpush2.msra.mxu0 0.0
    %356 = vmatprep.mubr.f32.mxu0 0.0
    %357 = vmatmul.mubr.f32.gmra.mxu0 %v290
    %v358 = vpop.f32.mrf.mxu0
    %v359 = vadd.f32 %v286, %v358
    %v360 = vpop.f32.mrf.mxu0
    %361 = vdwg.mxu0
    %v362 = vmax.f32 %v359, 0.0
    %v363 = vld [vmem:[#allocation11] sm:$0xff]
    %v364 = vld [vmem:[#allocation11 + $0x8] sm:$0xff]
    %v365 = vld [vmem:[#allocation11 + $0x10] sm:$0xff]
    %v366 = vld [vmem:[#allocation11 + $0x18] sm:$0xff]
    %v367 = vld [vmem:[%s8] sm:$0x1]
    %v369 = vlaneseq
    %v370 = vshrl.u32 %v369, 7
    %v371 = vsub.s32 0, %v370
    %v372 = vrot.slane %v367, %v371
    %v375 = vsel %vm288, %v362, 0
    %377 = vmatprep.subr.mxu0 0.0
    %378 = vmatpush1.msra.mxu0 0.0
    %379 = vmatprep.subr.mxu0 0.0
    %380 = vmatpush1.msra.mxu0 0.0
    %381 = vmatprep.subr.mxu0 0.0
    %382 = vmatpush1.msra.mxu0 0.0
    %383 = vmatprep.subr.mxu0 0.0
    %384 = vmatpush1.msra.mxu0 0.0
    %385 = vmatprep.subr.mxu0 0.0
    %386 = vmatpush1.msra.mxu0 0.0
    %387 = vmatprep.subr.mxu0 0.0
    %388 = vmatpush1.msra.mxu0 0.0
    %389 = vmatprep.subr.mxu0 0.0
    %390 = vmatpush1.msra.mxu0 0.0
    %391 = vmatprep.subr.mxu0 0.0
    %392 = vmatpush1.msra.mxu0 0.0
    %393 = vmatprep.subr.mxu0 0.0
    %394 = vmatpush1.msra.mxu0 0.0
    %395 = vmatprep.subr.mxu0 0.0
    %396 = vmatpush1.msra.mxu0 0.0
    %397 = vmatprep.subr.mxu0 0.0
    %398 = vmatpush1.msra.mxu0 0.0
    %399 = vmatprep.subr.mxu0 0.0
    %400 = vmatpush1.msra.mxu0 0.0
    %401 = vmatprep.subr.mxu0 0.0
    %402 = vmatpush1.msra.mxu0 %v366
    %403 = vmatprep.subr.mxu0 0.0
    %404 = vmatpush1.msra.mxu0 %v365
    %405 = vmatprep.subr.mxu0 0.0
    %406 = vmatpush1.msra.mxu0 %v364
    %407 = vmatprep.subr.mxu0 0.0
    %408 = vmatpush1.msra.mxu0 %v363
    %409 = vmatprep.subr.mxu0 0.0
    %410 = vmatpush2.msra.mxu0 0.0
    %411 = vmatprep.subr.mxu0 0.0
    %412 = vmatpush2.msra.mxu0 0.0
    %413 = vmatprep.subr.mxu0 0.0
    %414 = vmatpush2.msra.mxu0 0.0
    %415 = vmatprep.subr.mxu0 0.0
    %416 = vmatpush2.msra.mxu0 0.0
    %417 = vmatprep.subr.mxu0 0.0
    %418 = vmatpush2.msra.mxu0 0.0
    %419 = vmatprep.subr.mxu0 0.0
    %420 = vmatpush2.msra.mxu0 0.0
    %421 = vmatprep.subr.mxu0 0.0
    %422 = vmatpush2.msra.mxu0 0.0
    %423 = vmatprep.subr.mxu0 0.0
    %424 = vmatpush2.msra.mxu0 0.0
    %425 = vmatprep.subr.mxu0 0.0
    %426 = vmatpush2.msra.mxu0 0.0
    %427 = vmatprep.subr.mxu0 0.0
    %428 = vmatpush2.msra.mxu0 0.0
    %429 = vmatprep.subr.mxu0 0.0
    %430 = vmatpush2.msra.mxu0 0.0
    %431 = vmatprep.subr.mxu0 0.0
    %432 = vmatpush2.msra.mxu0 0.0
    %433 = vmatprep.subr.mxu0 0.0
    %434 = vmatpush2.msra.mxu0 0.0
    %435 = vmatprep.subr.mxu0 0.0
    %436 = vmatpush2.msra.mxu0 0.0
    %437 = vmatprep.subr.mxu0 0.0
    %438 = vmatpush2.msra.mxu0 0.0
    %439 = vmatprep.subr.mxu0 0.0
    %440 = vmatpush2.msra.mxu0 0.0
    %441 = vmatprep.mubr.f32.mxu0 0.0
    %442 = vmatmul.mubr.f32.gmra.mxu0 %v375
    %v443 = vpop.f32.mrf.mxu0
    %v444 = vadd.f32 %v372, %v443
    %v445 = vpop.f32.mrf.mxu0
    %446 = vdwg.mxu0
    %v447 = vmax.f32 %v444, 0.0
    %v448 = vld [vmem:[%s9] sm:$0x1]
    %v450 = vlaneseq
    %v451 = vshrl.u32 %v450, 7
    %v452 = vsub.s32 0, %v451
    %v453 = vrot.slane %v448, %v452
    %v455 = vmul.f32 %v447, %v453
    %v456 = vsel %vm288, %v455, 0.0
    %457 = vadd.xlane.f32.xlu0 %v456
    %v458 = vpop.xlane.xlu0 %457
    %s459 = sld [smem:[#allocation2]]
    %v460 = vstv %s459
    %v461 = vadd.f32 %v458, %v460
    %vm462 = vcmask 7168
    %463 = vst.msk [vmem:[%s11] sm:$0xff] %vm462, %v461
    // Predicated region
    $region70: #{tpu_custom_call.1} parent=1 // pred_check
      _
    $region71: #{tpu_custom_call.1} parent=1 // pred_check_branch
      %465 = sbr.rel (0) target = $region73
    $region72: #{tpu_custom_call.1} parent=1 // pred_region
      _
    $region73: #{tpu_custom_call.1} parent=1 // pred_fallthru
      _
    // Predicated region
    $region74: #{tpu_custom_call.1} parent=1 // pred_check
      _
    $region75: #{tpu_custom_call.1} parent=1 // pred_check_branch
      %467 = sbr.rel (0) target = $region77
    $region76: #{tpu_custom_call.1} parent=1 // pred_region
      _
    $region77: #{tpu_custom_call.1} parent=1 // pred_fallthru
      _
    %468 = vsyncpa [#allocation4], 1
    %469 = vsyncpa [#allocation6], 1
    %470 = vsyncpa [#allocation9], 1
    %471 = vsyncpa [#allocation12], 1

</llo_original>
